<compile_context>
chip_gen: v7x
topology: tpu7x:2x2x1
jax: 0.10.0
libtpu: 0.0.40
codegen_flags: <defaults>
</compile_context>

<pallas_src>
import functools

import jax
import jax.numpy as jnp
import numpy as np
from jax.experimental import pallas as pl
from jax.experimental.pallas import tpu as pltpu


# ---------------------------------------------------------------------------
# Hardware / tiling helpers
# ---------------------------------------------------------------------------
def _round_up(n, m):
    return ((n + m - 1) // m) * m


@functools.lru_cache(maxsize=None)
def _vmem_bytes():
    try:
        info = pltpu.get_tpu_info()
        v = int(getattr(info, "vmem_capacity_bytes", 0) or 0)
        if v > 0:
            return v
    except Exception:
        pass
    return 128 * 1024 * 1024


def _vmem_limit():
    # Explicit scoped-VMEM limit: generous but always below physical capacity
    # (v7x: 64 MiB per TensorCore -> 32 MiB; v5e/v6e: 128 MiB -> 64 MiB).
    return int(min(64 * 1024 * 1024, max(16 * 1024 * 1024, _vmem_bytes() // 2)))


def _plan_tiles(n, cout, override=None):
    """Return (n_pad, TM_dst, TS_src) for the aggregate stage.

    Everything is padded to n_pad so block shapes always divide the arrays
    (no full-extent fallback / VMEM blow-up for awkward N).
    """
    if override is not None:
        tm, ts = override
    elif n <= 512:
        n_pad = _round_up(n, 8)
        return n_pad, n_pad, n_pad
    else:
        # TM multiple of 128 (A^T blocks put dst on lanes); >=2 dst tiles keeps
        # both v7x TensorCores busy on the 'parallel' axis.
        tm = 128 if n <= 2048 else 256
        # Generation-aware per-step working-set budget (v7x VMEM is 64 MiB/TC).
        budget = min(_vmem_bytes() // 8, 12 * 1024 * 1024)
        per_ts = 2 * tm * 2 + 2 * cout * 4            # dbl-buffered A^T(bf16) + Y(f32)
        resident = 8 * tm * max(cout, 128) * 4        # slab/out/acc, generous
        ts = max(tm, (budget - resident) // per_ts)
        ts = min(ts, 2048, _round_up(n, tm))
        ts = max(tm, (ts // tm) * tm)
    assert ts % tm == 0 and tm % 8 == 0 and ts % 8 == 0
    n_pad = _round_up(n, ts)
    return n_pad, tm, ts


# ---------------------------------------------------------------------------
# Pallas kernels
# ---------------------------------------------------------------------------
def _node_transform_kernel(x_ref, w_ref, b_ref, mask_ref, y_ref, slab_ref, *, cout, act):
    # One wide MXU matmul: [TM, Cin] @ [Cin, 6*Cout]  (BN affine already folded
    # into w/b by the wrapper).
    z = jnp.dot(x_ref[...], w_ref[...], preferred_element_type=jnp.float32) + b_ref[...]
    y       = z[:, 0 * cout:1 * cout]                    # x W_lin
    s       = z[:, 1 * cout:2 * cout]                    # x W_skip
    beta    = z[:, 2 * cout:3 * cout] * mask_ref[...]    # x W_film + b, deg>0 masked
    gamma   = z[:, 3 * cout:4 * cout]
    beta_s  = z[:, 4 * cout:5 * cout]                    # x W_film_skip (no bias)
    gamma_s = z[:, 5 * cout:6 * cout]

    skip = gamma_s * s + beta_s
    if act:
        skip = jnp.maximum(skip, 0.0)

    y_ref[...] = y
    # Single lane-dense dst slab (one wide HBM write stream instead of three).
    slab_ref[...] = jnp.concatenate([skip, beta, gamma], axis=1)


def _film_aggregate_kernel(nnz_ref, at_ref, y_ref, slab_ref, invdeg_ref,
                           o_ref, acc_ref, *, cout, act):
    i = pl.program_id(0)
    k = pl.program_id(1)
    nk = pl.num_programs(1)

    @pl.when(k == 0)
    def _():
        acc_ref[...] = jnp.zeros_like(acc_ref)

    # Skip all-zero adjacency tiles (per-tile nnz table, scalar-prefetched to SMEM).
    @pl.when(nnz_ref[i * nk + k] != 0)
    def _():
        if act:
            # msg_{i<-j} = relu(gamma_i * y_j + beta_i); weighted sum over the
            # source tile, chunked so the 3-D temporary is bounded to [8, TM, C].
            # (On v6e/v7x this elementwise chain could additionally run in bf16.)
            ts = y_ref.shape[0]
            ch = 8
            beta = slab_ref[:, cout:2 * cout][None, :, :]       # [1, TM, C]
            gamma = slab_ref[:, 2 * cout:3 * cout][None, :, :]  # [1, TM, C]

            def body(c, acc):
                base = pl.multiple_of(c * ch, ch)
                a_blk = at_ref[pl.ds(base, ch), :].astype(jnp.float32)    # [CH, TM]
                y_blk = y_ref[pl.ds(base, ch), :]                          # [CH, C]
                msg = jnp.maximum(gamma * y_blk[:, None, :] + beta, 0.0)   # [CH, TM, C]
                return acc + jnp.sum(a_blk[:, :, None] * msg, axis=0)

            acc_ref[...] = jax.lax.fori_loop(0, ts // ch, body, acc_ref[...])
        else:
            # act=None: mean_j(gamma*y_j+beta) = gamma*(A@Y)/deg + mask*beta, so
            # the heavy part is a single MXU matmul (contract the src dim of A^T).
            acc_ref[...] += jax.lax.dot_general(
                at_ref[...].astype(jnp.float32), y_ref[...],
                dimension_numbers=(((0,), (0,)), ((), ())),
                preferred_element_type=jnp.float32)

    @pl.when(k == nk - 1)
    def _():
        agg = acc_ref[...] * invdeg_ref[...]          # 1/max(deg,1), precomputed
        skip = slab_ref[:, 0:cout]
        if act:
            o_ref[...] = skip + agg
        else:
            beta = slab_ref[:, cout:2 * cout]         # already deg>0-masked
            gamma = slab_ref[:, 2 * cout:3 * cout]
            o_ref[...] = skip + gamma * agg + beta


def _colstats_kernel(x_ref, valid_ref, s_ref, q_ref):
    # Tiled column sum / sum-of-squares for BatchNorm batch statistics
    # (padded rows are excluded via the validity mask).
    @pl.when(pl.program_id(0) == 0)
    def _():
        s_ref[...] = jnp.zeros_like(s_ref)
        q_ref[...] = jnp.zeros_like(q_ref)
    x = x_ref[...] * valid_ref[...]
    s_ref[...] += jnp.sum(x, axis=0, keepdims=True)
    q_ref[...] += jnp.sum(x * x, axis=0, keepdims=True)


# ---------------------------------------------------------------------------
# Wrappers
# ---------------------------------------------------------------------------
def node_transform(x, w_cat, b_cat, mask, cout, act, tm):
    n, cin = x.shape
    wcols = w_cat.shape[1]
    kernel = functools.partial(_node_transform_kernel, cout=cout, act=act)
    return pl.pallas_call(
        kernel,
        out_shape=(jax.ShapeDtypeStruct((n, cout), jnp.float32),
                   jax.ShapeDtypeStruct((n, 3 * cout), jnp.float32)),
        grid=(n // tm,),
        in_specs=[
            pl.BlockSpec((tm, cin), lambda i: (i, 0)),      # x row tile
            pl.BlockSpec((cin, wcols), lambda i: (0, 0)),   # fused weights
            pl.BlockSpec((1, wcols), lambda i: (0, 0)),     # fused bias
            pl.BlockSpec((tm, 1), lambda i: (i, 0)),        # deg>0 mask
        ],
        out_specs=(pl.BlockSpec((tm, cout), lambda i: (i, 0)),
                   pl.BlockSpec((tm, 3 * cout), lambda i: (i, 0))),
        compiler_params=pltpu.CompilerParams(
            dimension_semantics=("parallel",),
            vmem_limit_bytes=_vmem_limit()),
    )(x, w_cat, b_cat, mask)


def film_aggregate(a_t, y, slab, inv_deg, tile_nnz, act, tm, ts):
    n, cout = y.shape
    ni, nk = n // tm, n // ts
    kernel = functools.partial(_film_aggregate_kernel, cout=cout, act=act)
    grid_spec = pltpu.PrefetchScalarGridSpec(
        num_scalar_prefetch=1,
        grid=(ni, nk),
        in_specs=[
            pl.BlockSpec((ts, tm), lambda i, k, nnz: (k, i)),          # A^T tile (bf16)
            pl.BlockSpec((ts, cout), lambda i, k, nnz: (k, 0)),        # Y source tile
            pl.BlockSpec((tm, 3 * cout), lambda i, k, nnz: (i, 0)),    # skip|beta|gamma (dst)
            pl.BlockSpec((tm, 1), lambda i, k, nnz: (i, 0)),           # 1/max(deg,1)
        ],
        out_specs=pl.BlockSpec((tm, cout), lambda i, k, nnz: (i, 0)),
        scratch_shapes=[pltpu.VMEM((tm, cout), jnp.float32)],
    )
    return pl.pallas_call(
        kernel,
        out_shape=jax.ShapeDtypeStruct((n, cout), jnp.float32),
        grid_spec=grid_spec,
        compiler_params=pltpu.CompilerParams(
            dimension_semantics=("parallel", "arbitrary"),
            vmem_limit_bytes=_vmem_limit()),
    )(tile_nnz, a_t, y, slab, inv_deg)


def col_stats(x, valid, tm):
    n, c = x.shape
    return pl.pallas_call(
        _colstats_kernel,
        out_shape=(jax.ShapeDtypeStruct((1, c), jnp.float32),
                   jax.ShapeDtypeStruct((1, c), jnp.float32)),
        grid=(n // tm,),
        in_specs=[pl.BlockSpec((tm, c), lambda i: (i, 0)),
                  pl.BlockSpec((tm, 1), lambda i: (i, 0))],
        out_specs=(pl.BlockSpec((1, c), lambda i: (0, 0)),
                   pl.BlockSpec((1, c), lambda i: (0, 0))),
        compiler_params=pltpu.CompilerParams(dimension_semantics=("arbitrary",)),
    )(x, valid)


def _concat_params(p):
    cout = p["w_lin"].shape[1]
    w_cat = jnp.concatenate(
        [p["w_lin"], p["w_skip"], p["w_film_beta"], p["w_film_gamma"],
         p["w_fskip_beta"], p["w_fskip_gamma"]], axis=1)
    zeros = jnp.zeros((1, cout), jnp.float32)
    b_cat = jnp.concatenate(
        [zeros, zeros, p["b_film_beta"], p["b_film_gamma"], zeros, zeros], axis=1)
    return w_cat, b_cat


def film_conv(x, a_t, tile_nnz, inv_deg, mask, w_cat, b_cat, *,
              act, scale, shift, tm, ts):
    cout = w_cat.shape[1] // 6
    if scale is not None:
        # Fold the previous BatchNorm's per-channel affine into the fused weights:
        # (x*a + c) @ W + b = x @ (a^T * W) + (c @ W + b).
        b_cat = b_cat + shift @ w_cat
        w_cat = scale.reshape(-1, 1) * w_cat
    y, slab = node_transform(x, w_cat, b_cat, mask, cout, act, tm)
    return film_aggregate(a_t, y, slab, inv_deg, tile_nnz, act, tm, ts)


def film_forward(x, A, conv_params, bn_params, *, tile_override=None):
    n = x.shape[0]
    hid = conv_params[0]["w_lin"].shape[1]
    n_pad, tm, ts = _plan_tiles(n, hid, tile_override)

    # Pad the graph once (padded nodes have no edges, never reach real nodes,
    # and are excluded from the BatchNorm statistics via `valid`).
    if n_pad != n:
        A_p = jnp.pad(A, ((0, n_pad - n), (0, n_pad - n)))
        x_p = jnp.pad(x, ((0, n_pad - n), (0, 0)))
    else:
        A_p, x_p = A, x

    deg = jnp.sum(A_p, axis=1, keepdims=True)                       # [n_pad, 1]
    inv_deg = 1.0 / jnp.maximum(deg, 1.0)
    mask = (deg > 0).astype(jnp.float32)                            # folded into beta
    valid = (jnp.arange(n_pad) < n).astype(jnp.float32)[:, None]    # real-node rows

    # Source-major adjacency in bf16 (small edge counts are exact in bf16;
    # int8 would be possible on v5e/v6e but the v7x MXU has no int path).
    a_t = A_p.T.astype(jnp.bfloat16)
    ni, nk = n_pad // tm, n_pad // ts
    tile_nnz = (A_p.reshape(ni, tm, nk, ts).sum(axis=(1, 3)) > 0).astype(jnp.int32).reshape(-1)

    cats = [_concat_params(p) for p in conv_params]      # hoisted out of the layer loop

    h = x_p
    scale = shift = None
    for (w_cat, b_cat), (bn_w, bn_b) in zip(cats[:-1], bn_params):
        h = film_conv(h, a_t, tile_nnz, inv_deg, mask, w_cat, b_cat,
                      act=True, scale=scale, shift=shift, tm=tm, ts=ts)
        # BatchNorm1d, training-mode batch statistics (biased variance, eps=1e-5):
        # column stats via a tiled Pallas reduction, affine folded into the NEXT
        # layer's fused weights (no extra HBM round trip over the activations).
        s, q = col_stats(h, valid, tm)
        mean = s / n
        var = jnp.maximum(q / n - mean * mean, 0.0)
        a = bn_w * jax.lax.rsqrt(var + 1e-5)
        scale, shift = a, bn_b - mean * a
        # dropout(p=0.0) -> identity.

    w_cat, b_cat = cats[-1]
    out = film_conv(h, a_t, tile_nnz, inv_deg, mask, w_cat, b_cat,
                    act=False, scale=scale, shift=shift, tm=tm, ts=ts)
    return out[:n]


# ---------------------------------------------------------------------------
# Pure-JAX reference (for correctness check)
# ---------------------------------------------------------------------------
def _film_conv_ref(x, A, p, act):
    y = x @ p["w_lin"]
    s = x @ p["w_skip"]
    beta = x @ p["w_film_beta"] + p["b_film_beta"]
    gamma = x @ p["w_film_gamma"] + p["b_film_gamma"]
    beta_s = x @ p["w_fskip_beta"]
    gamma_s = x @ p["w_fskip_gamma"]
    skip = gamma_s * s + beta_s
    if act:
        skip = jnp.maximum(skip, 0.0)
    msg = gamma[:, None, :] * y[None, :, :] + beta[:, None, :]
    if act:
        msg = jnp.maximum(msg, 0.0)
    agg = (A[:, :, None] * msg).sum(1) / jnp.maximum(A.sum(1, keepdims=True), 1.0)
    return skip + agg


def _bn_ref(x, w, b):
    mean = x.mean(0, keepdims=True)
    var = ((x - mean) ** 2).mean(0, keepdims=True)
    return (x - mean) * jax.lax.rsqrt(var + 1e-5) * w + b


def film_forward_ref(x, A, conv_params, bn_params):
    for p, (bw, bb) in zip(conv_params[:-1], bn_params):
        x = _bn_ref(_film_conv_ref(x, A, p, act=True), bw, bb)
    return _film_conv_ref(x, A, conv_params[-1], act=False)


# ---------------------------------------------------------------------------
# Deterministic parameter init (FiLMConv: lins/lin_skip/film_skip bias-free,
# film Linear with bias; BatchNorm1d: weight=1, bias=0)
# ---------------------------------------------------------------------------
def init_film_conv(key, cin, cout):
    ks = jax.random.split(key, 5)

    def u(k, shape, fan_in):
        bnd = 1.0 / np.sqrt(fan_in)
        return jax.random.uniform(k, shape, jnp.float32, -bnd, bnd)

    w_film = u(ks[2], (cin, 2 * cout), cin)
    b_film = u(ks[3], (1, 2 * cout), cin)
    w_fskip = u(ks[4], (cin, 2 * cout), cin)
    return {
        "w_lin": u(ks[0], (cin, cout), cin),
        "w_skip": u(ks[1], (cin, cout), cin),
        "w_film_beta": w_film[:, :cout], "w_film_gamma": w_film[:, cout:],
        "b_film_beta": b_film[:, :cout], "b_film_gamma": b_film[:, cout:],
        "w_fskip_beta": w_fskip[:, :cout], "w_fskip_gamma": w_fskip[:, cout:],
    }


if __name__ == "__main__":
    in_c, hid_c, out_c, num_layers = 4, 32, 8, 3

    key = jax.random.PRNGKey(0)
    kg1, kg2, kp = jax.random.split(key, 3)

    dims = [(in_c, hid_c)] + [(hid_c, hid_c)] * (num_layers - 2) + [(hid_c, out_c)]
    pkeys = jax.random.split(kp, len(dims))
    conv_params = [init_film_conv(k, ci, co) for k, (ci, co) in zip(pkeys, dims)]
    bn_params = [(jnp.ones((1, hid_c), jnp.float32), jnp.zeros((1, hid_c), jnp.float32))
                 for _ in range(num_layers - 1)]

    def build_graph(k, n, e):
        kx, ke1, ke2 = jax.random.split(k, 3)
        xg = jax.random.normal(kx, (n, in_c), jnp.float32)
        src = jax.random.randint(ke1, (e,), 0, n)                   # edge_index[0] = j
        dst = jax.random.randint(ke2, (e,), 0, n)                   # edge_index[1] = i
        Ag = jnp.zeros((n, n), jnp.float32).at[dst, src].add(1.0)   # dense counts [dst, src]
        return xg, Ag

    # Small case (single-tile fast path).
    x, A = build_graph(kg1, 16, 48)
    out = jax.block_until_ready(film_forward(x, A, conv_params, bn_params))
    ref = film_forward_ref(x, A, conv_params, bn_params)
    np.testing.assert_allclose(np.asarray(out), np.asarray(ref), rtol=2e-4, atol=2e-4)
    assert out.shape == (16, out_c)

    # Multi-tile / padded path (exercises the grid accumulator, zero-tile skip,
    # bf16 A^T, row padding and the BatchNorm fold across tiles).
    x2, A2 = build_graph(kg2, 200, 600)
    out2 = jax.block_until_ready(
        film_forward(x2, A2, conv_params, bn_params, tile_override=(128, 128)))
    ref2 = film_forward_ref(x2, A2, conv_params, bn_params)
    np.testing.assert_allclose(np.asarray(out2), np.asarray(ref2), rtol=5e-4, atol=5e-4)
    assert out2.shape == (200, out_c)

    print("KERNEL_OK")
</pallas_src>

<mosaic_0001>
module attributes {stable_mosaic.version = 11 : i64} {
  func.func @_node_transform_kernel(%arg0: i32, %arg1: memref<16x4xf32, #tpu.memory_space<vmem>>, %arg2: memref<4x192xf32, #tpu.memory_space<vmem>>, %arg3: memref<1x192xf32, #tpu.memory_space<vmem>>, %arg4: memref<16x1xf32, #tpu.memory_space<vmem>>, %arg5: memref<16x32xf32, #tpu.memory_space<vmem>>, %arg6: memref<16x96xf32, #tpu.memory_space<vmem>>) attributes {dimension_semantics = [#tpu.dimension_semantics<parallel>], iteration_bounds = array<i64: 1>, scalar_prefetch = 0 : i64, scratch_operands = 0 : i64, tpu.core_type = #tpu.core_type<tc>, window_params = [{transform_indices = @transform_0, window_bounds = array<i64: 16, 4>}, {pipeline_mode = #tpu.pipeline_mode<synchronous>, transform_indices = @transform_1, window_bounds = array<i64: 4, 192>}, {pipeline_mode = #tpu.pipeline_mode<synchronous>, transform_indices = @transform_2, window_bounds = array<i64: 1, 192>}, {transform_indices = @transform_3, window_bounds = array<i64: 16, 1>}, {transform_indices = @transform_4, window_bounds = array<i64: 16, 32>}, {transform_indices = @transform_5, window_bounds = array<i64: 16, 96>}]} {
    %c0 = arith.constant 0 : index
    %c0_0 = arith.constant 0 : index
    %0 = vector.load %arg1[%c0, %c0_0] : memref<16x4xf32, #tpu.memory_space<vmem>>, vector<16x4xf32>
    %c0_1 = arith.constant 0 : index
    %c0_2 = arith.constant 0 : index
    %1 = vector.load %arg2[%c0_1, %c0_2] : memref<4x192xf32, #tpu.memory_space<vmem>>, vector<4x192xf32>
    %cst = arith.constant dense<0.000000e+00> : vector<16x192xf32>
    %2 = tpu.matmul %0, %1, %cst {dimension_numbers = #tpu.dot_dimension_numbers<[1], [0], [0], [1], [0, 0, 1, 1], [], []>} : vector<16x4xf32>, vector<4x192xf32>, vector<16x192xf32> -> vector<16x192xf32>
    %c0_3 = arith.constant 0 : index
    %c0_4 = arith.constant 0 : index
    %3 = vector.load %arg3[%c0_3, %c0_4] : memref<1x192xf32, #tpu.memory_space<vmem>>, vector<1x192xf32>
    %4 = vector.broadcast %3 : vector<1x192xf32> to vector<16x192xf32>
    %5 = arith.addf %2, %4 : vector<16x192xf32>
    %6 = vector.extract_strided_slice %5 {offsets = [0, 0], sizes = [16, 32], strides = [1, 1]} : vector<16x192xf32> to vector<16x32xf32>
    %7 = vector.extract_strided_slice %5 {offsets = [0, 32], sizes = [16, 32], strides = [1, 1]} : vector<16x192xf32> to vector<16x32xf32>
    %8 = vector.extract_strided_slice %5 {offsets = [0, 64], sizes = [16, 32], strides = [1, 1]} : vector<16x192xf32> to vector<16x32xf32>
    %c0_5 = arith.constant 0 : index
    %c0_6 = arith.constant 0 : index
    %9 = vector.load %arg4[%c0_5, %c0_6] : memref<16x1xf32, #tpu.memory_space<vmem>>, vector<16x1xf32>
    %10 = vector.broadcast %9 : vector<16x1xf32> to vector<16x32xf32>
    %11 = arith.mulf %8, %10 : vector<16x32xf32>
    %12 = vector.extract_strided_slice %5 {offsets = [0, 96], sizes = [16, 32], strides = [1, 1]} : vector<16x192xf32> to vector<16x32xf32>
    %13 = vector.extract_strided_slice %5 {offsets = [0, 128], sizes = [16, 32], strides = [1, 1]} : vector<16x192xf32> to vector<16x32xf32>
    %14 = vector.extract_strided_slice %5 {offsets = [0, 160], sizes = [16, 32], strides = [1, 1]} : vector<16x192xf32> to vector<16x32xf32>
    %15 = arith.mulf %14, %7 : vector<16x32xf32>
    %16 = arith.addf %15, %13 : vector<16x32xf32>
    %cst_7 = arith.constant 0.000000e+00 : f32
    %17 = vector.broadcast %cst_7 : f32 to vector<16x32xf32>
    %18 = arith.maximumf %16, %17 : vector<16x32xf32>
    %c0_8 = arith.constant 0 : index
    %c0_9 = arith.constant 0 : index
    %19 = vector.load %arg5[%c0_8, %c0_9] : memref<16x32xf32, #tpu.memory_space<vmem>>, vector<16x32xf32>
    tpu.vector_store %arg5[%c0_8, %c0_9], %6 {strides = array<i32>} : memref<16x32xf32, #tpu.memory_space<vmem>>, vector<16x32xf32>,
    %20 = tpu.concatenate %18, %11, %12 in 1 : vector<16x32xf32>, vector<16x32xf32>, vector<16x32xf32> -> vector<16x96xf32>
    %c0_10 = arith.constant 0 : index
    %c0_11 = arith.constant 0 : index
    %21 = vector.load %arg6[%c0_10, %c0_11] : memref<16x96xf32, #tpu.memory_space<vmem>>, vector<16x96xf32>
    tpu.vector_store %arg6[%c0_10, %c0_11], %20 {strides = array<i32>} : memref<16x96xf32, #tpu.memory_space<vmem>>, vector<16x96xf32>,
    return
  }
  func.func @transform_0(%arg0: i32) -> (i32, i32) {
    %c0_i32 = arith.constant 0 : i32
    %c0_i32_0 = arith.constant 0 : i32
    return %arg0, %c0_i32 : i32, i32
  }
  func.func @transform_1(%arg0: i32) -> (i32, i32) {
    %c0_i32 = arith.constant 0 : i32
    %c0_i32_0 = arith.constant 0 : i32
    %c0_i32_1 = arith.constant 0 : i32
    return %c0_i32, %c0_i32_0 : i32, i32
  }
  func.func @transform_2(%arg0: i32) -> (i32, i32) {
    %c0_i32 = arith.constant 0 : i32
    %c0_i32_0 = arith.constant 0 : i32
    %c0_i32_1 = arith.constant 0 : i32
    return %c0_i32, %c0_i32_0 : i32, i32
  }
  func.func @transform_3(%arg0: i32) -> (i32, i32) {
    %c0_i32 = arith.constant 0 : i32
    %c0_i32_0 = arith.constant 0 : i32
    return %arg0, %c0_i32 : i32, i32
  }
  func.func @transform_4(%arg0: i32) -> (i32, i32) {
    %c0_i32 = arith.constant 0 : i32
    %c0_i32_0 = arith.constant 0 : i32
    return %arg0, %c0_i32 : i32, i32
  }
  func.func @transform_5(%arg0: i32) -> (i32, i32) {
    %c0_i32 = arith.constant 0 : i32
    %c0_i32_0 = arith.constant 0 : i32
    return %arg0, %c0_i32 : i32, i32
  }
}

</mosaic_0001>

<llo_original>
// kernel: tpu_custom_call.1
$region0: #{tpu_custom_call.1}
  #allocation0 [shape = 'u32[]', space=smem, size = 0x4, offset = 0x4, fixed_abs, tag = 'smem constant byte address 0x4 - core index']
  #allocation1 [shape = 'u32[144,128]{1,0:T(1,128)}', space=vmem, size = 0x12000, scoped, tag = 'internal scratch']
  %s0 = inlined_call_operand.hbm [shape: f32[16,4], index: 0, kind: input, shape index: {}]
  %s1 = inlined_call_operand.hbm [shape: f32[4,192], index: 1, kind: input, shape index: {}]
  %s2 = inlined_call_operand.hbm [shape: f32[1,192], index: 2, kind: input, shape index: {}]
  %s3 = inlined_call_operand.hbm [shape: f32[16,1], index: 3, kind: input, shape index: {}]
  %s4 = inlined_call_operand.hbm [shape: f32[16,32], index: 4, kind: output, shape index: {0}]
  %s5 = inlined_call_operand.hbm [shape: f32[16,96], index: 5, kind: output, shape index: {1}]
  %6 = xla_tuple %s4, %s5
  %s7 = sld [smem:[#allocation0]]
  $region50: #{tpu_custom_call.1} parent=0
    _
  %s9 = ssub.s32 1, %s7
  %s10 = scalar_select 0, %s9, %s7
  $region1: #{tpu_custom_call.1} parent=0
    #allocation2 [shape = 'u8[8192]{0}', space=vmem, size = 0x2000, scoped, tag = 'input window, operand 0, single buffered']
    #allocation3 [shape = 's32[1]{0}', space=sflag, size = 0x4, scoped, tag = 'scoped memory for tpu_custom_call.1']
    #allocation4 [shape = 's32[1]{0}', space=sflag, size = 0x4, scoped, tag = 'scoped memory for tpu_custom_call.1']
    #allocation5 [shape = 'u8[4096]{0}', space=vmem, size = 0x1000, scoped, tag = 'input window, operand 1, single buffered']
    #allocation6 [shape = 's32[1]{0}', space=sflag, size = 0x4, scoped, tag = 'scoped memory for tpu_custom_call.1']
    #allocation7 [shape = 'u8[1024]{0}', space=vmem, size = 0x400, scoped, tag = 'input window, operand 2, single buffered']
    #allocation8 [shape = 'u8[8192]{0}', space=vmem, size = 0x2000, scoped, tag = 'input window, operand 3, single buffered']
    #allocation9 [shape = 's32[1]{0}', space=sflag, size = 0x4, scoped, tag = 'scoped memory for tpu_custom_call.1']
    #allocation10 [shape = 'u8[8192]{0}', space=vmem, size = 0x2000, scoped, tag = 'output window, operand 0, single buffered']
    #allocation11 [shape = 'u8[8192]{0}', space=vmem, size = 0x2000, scoped, tag = 'output window, operand 1, single buffered']
    #allocation12 [shape = 's32[1]{0}', space=sflag, size = 0x4, scoped, tag = 'scoped memory for tpu_custom_call.1']
    %11 = vsyncpa [#allocation3], 0
    %12 = vsyncpa [#allocation6], 0
    %13 = vsyncpa [#allocation9], 0
    %14 = vsyncpa [#allocation4], 0
    %15 = vsyncpa [#allocation12], 0
    // Predicated region
    $region2: #{tpu_custom_call.1} parent=1 // pred_check
      _
    $region3: #{tpu_custom_call.1} parent=1 // pred_check_branch
      %17 = sbr.rel (0) target = $region5
    $region4: #{tpu_custom_call.1} parent=1 // pred_region
      %s19 = ssub.s32 256, 256
      %20 = vsyncadd [#allocation3], %s19
      %s21 = sshll.u32 [#allocation2], 4
      %s22 = int_to_ptr.vmem [resolvable:$true] %s21
      %27 = dma.hbm_to_vmem [thread:$0]  %s0, 256, %s22, [#allocation3], 128, 128, 8
    $region5: #{tpu_custom_call.1} parent=1 // pred_fallthru
      _
    // Predicated region
    $region6: #{tpu_custom_call.1} parent=1 // pred_check
      _
    $region7: #{tpu_custom_call.1} parent=1 // pred_check_branch
      %29 = sbr.rel (0) target = $region9
    $region8: #{tpu_custom_call.1} parent=1 // pred_region
      %s31 = ssub.s32 128, 128
      %32 = vsyncadd [#allocation6], %s31
      %s34 = sshll.u32 [#allocation5], 4
      %s35 = int_to_ptr.vmem [resolvable:$true] %s34
      %37 = dma.hbm_to_vmem [thread:$0]  %s1, 128, %s35, [#allocation6]
    $region9: #{tpu_custom_call.1} parent=1 // pred_fallthru
      _
    // Predicated region
    $region10: #{tpu_custom_call.1} parent=1 // pred_check
      _
    $region11: #{tpu_custom_call.1} parent=1 // pred_check_branch
      %39 = sbr.rel (0) target = $region13
    $region12: #{tpu_custom_call.1} parent=1 // pred_region
      %s41 = ssub.s32 32, 32
      %42 = vsyncadd [#allocation6], %s41
      %s44 = sshll.u32 [#allocation7], 4
      %s45 = int_to_ptr.vmem [resolvable:$true] %s44
      %47 = dma.hbm_to_vmem [thread:$0]  %s2, 32, %s45, [#allocation6]
    $region13: #{tpu_custom_call.1} parent=1 // pred_fallthru
      _
    // Predicated region
    $region14: #{tpu_custom_call.1} parent=1 // pred_check
      _
    $region15: #{tpu_custom_call.1} parent=1 // pred_check_branch
      %49 = sbr.rel (0) target = $region17
    $region16: #{tpu_custom_call.1} parent=1 // pred_region
      %s51 = ssub.s32 256, 256
      %52 = vsyncadd [#allocation9], %s51
      %s53 = sshll.u32 [#allocation8], 4
      %s54 = int_to_ptr.vmem [resolvable:$true] %s53
      %59 = dma.hbm_to_vmem [thread:$0]  %s3, 256, %s54, [#allocation9], 128, 128, 8
    $region17: #{tpu_custom_call.1} parent=1 // pred_fallthru
      _
    // Predicated region
    $region18: #{tpu_custom_call.1} parent=1 // pred_check
      _
    $region19: #{tpu_custom_call.1} parent=1 // pred_check_branch
      %61 = sbr.rel (0) target = $region21
    $region20: #{tpu_custom_call.1} parent=1 // pred_region
      %62 = dma.done [#allocation3], 256
    $region21: #{tpu_custom_call.1} parent=1 // pred_fallthru
      _
    // Predicated region
    $region22: #{tpu_custom_call.1} parent=1 // pred_check
      _
    $region23: #{tpu_custom_call.1} parent=1 // pred_check_branch
      %64 = sbr.rel (0) target = $region25
    $region24: #{tpu_custom_call.1} parent=1 // pred_region
      %65 = dma.done [#allocation6], 128
    $region25: #{tpu_custom_call.1} parent=1 // pred_fallthru
      _
    // Predicated region
    $region26: #{tpu_custom_call.1} parent=1 // pred_check
      _
    $region27: #{tpu_custom_call.1} parent=1 // pred_check_branch
      %67 = sbr.rel (0) target = $region29
    $region28: #{tpu_custom_call.1} parent=1 // pred_region
      %68 = dma.done [#allocation6], 32
    $region29: #{tpu_custom_call.1} parent=1 // pred_fallthru
      _
    // Predicated region
    $region30: #{tpu_custom_call.1} parent=1 // pred_check
      _
    $region31: #{tpu_custom_call.1} parent=1 // pred_check_branch
      %70 = sbr.rel (0) target = $region33
    $region32: #{tpu_custom_call.1} parent=1 // pred_region
      %71 = dma.done [#allocation9], 256
    $region33: #{tpu_custom_call.1} parent=1 // pred_fallthru
      _
    %v72 = vld [vmem:[#allocation2] sm:$0xff]
    %v73 = vld [vmem:[#allocation2 + $0x8] sm:$0xff]
    %v74 = vld [vmem:[#allocation5] sm:$0xff]
    %v75 = vld [vmem:[#allocation7] sm:$0x3]
    %v77 = vlaneseq
    %v78 = vshrl.u32 %v77, 7
    %v79 = vsub.s32 0, %v78
    %v80 = vrot.slane %v75, %v79
    %v81 = vlaneseq
    %v82 = vshrl.u32 %v81, 7
    %v83 = vsub.s32 1, %v82
    %v84 = vrot.slane %v75, %v83
    %v88 = vcombine.high %v74, %v74
    %vm89 = vcmask 31744
    %v91 = vsel %vm89, %v72, 0
    %v94 = vsel %vm89, %v73, 0
    %vm96 = vcmask 1043456
    %v97 = vsel %vm96, %v74, 0
    %v99 = vsel %vm96, %v88, 0
    %101 = vmatprep.subr.mxu0 %v99
    %102 = vmatpush1.msra.mxu0 %v97
    %103 = vmatprep.subr.mxu0 0.0
    %104 = vmatpush1.msra.mxu0 0.0
    %105 = vmatprep.subr.mxu0 0.0
    %106 = vmatpush1.msra.mxu0 0.0
    %107 = vmatprep.subr.mxu0 0.0
    %108 = vmatpush1.msra.mxu0 0.0
    %109 = vmatprep.subr.mxu0 0.0
    %110 = vmatpush1.msra.mxu0 0.0
    %111 = vmatprep.subr.mxu0 0.0
    %112 = vmatpush1.msra.mxu0 0.0
    %113 = vmatprep.subr.mxu0 0.0
    %114 = vmatpush1.msra.mxu0 0.0
    %115 = vmatprep.subr.mxu0 0.0
    %116 = vmatpush1.msra.mxu0 0.0
    %117 = vmatprep.subr.mxu0 0.0
    %118 = vmatpush1.msra.mxu0 0.0
    %119 = vmatprep.subr.mxu0 0.0
    %120 = vmatpush1.msra.mxu0 0.0
    %121 = vmatprep.subr.mxu0 0.0
    %122 = vmatpush1.msra.mxu0 0.0
    %123 = vmatprep.subr.mxu0 0.0
    %124 = vmatpush1.msra.mxu0 0.0
    %125 = vmatprep.subr.mxu0 0.0
    %126 = vmatpush1.msra.mxu0 0.0
    %127 = vmatprep.subr.mxu0 0.0
    %128 = vmatpush1.msra.mxu0 0.0
    %129 = vmatprep.subr.mxu0 0.0
    %130 = vmatpush1.msra.mxu0 0.0
    %131 = vmatprep.subr.mxu0 0.0
    %132 = vmatpush1.msra.mxu0 0.0
    %133 = vmatprep.subr.mxu0 0.0
    %134 = vmatpush1.msra.mxu0 0.0
    %135 = vmatprep.subr.mxu0 0.0
    %136 = vmatpush1.msra.mxu0 0.0
    %137 = vmatprep.subr.mxu0 0.0
    %138 = vmatpush1.msra.mxu0 0.0
    %139 = vmatprep.subr.mxu0 0.0
    %140 = vmatpush1.msra.mxu0 0.0
    %141 = vmatprep.subr.mxu0 0.0
    %142 = vmatpush1.msra.mxu0 0.0
    %143 = vmatprep.subr.mxu0 0.0
    %144 = vmatpush1.msra.mxu0 0.0
    %145 = vmatprep.subr.mxu0 0.0
    %146 = vmatpush1.msra.mxu0 0.0
    %147 = vmatprep.subr.mxu0 0.0
    %148 = vmatpush1.msra.mxu0 0.0
    %149 = vmatprep.subr.mxu0 0.0
    %150 = vmatpush1.msra.mxu0 0.0
    %151 = vmatprep.subr.mxu0 0.0
    %152 = vmatpush1.msra.mxu0 0.0
    %153 = vmatprep.subr.mxu0 0.0
    %154 = vmatpush1.msra.mxu0 0.0
    %155 = vmatprep.subr.mxu0 0.0
    %156 = vmatpush1.msra.mxu0 0.0
    %157 = vmatprep.subr.mxu0 0.0
    %158 = vmatpush1.msra.mxu0 0.0
    %159 = vmatprep.subr.mxu0 0.0
    %160 = vmatpush1.msra.mxu0 0.0
    %161 = vmatprep.subr.mxu0 0.0
    %162 = vmatpush1.msra.mxu0 0.0
    %163 = vmatprep.subr.mxu0 0.0
    %164 = vmatpush1.msra.mxu0 0.0
    %165 = vmatprep.mubr.f32.mxu0 0.0
    %166 = vmatmul.mubr.f32.gmra.mrb[0].mxu0 %v91
    %v167 = vpop.f32.mrb[0].mxu0
    %v168 = vadd.f32 %v80, %v167
    %v169 = vpop.f32.mrb[0].mxu0
    %v170 = vadd.f32 %v84, %v169
    %171 = vmatprep.mubr.f32.mxu0 0.0
    %172 = vmatmul.mubr.f32.gmra.mrb[0].mxu0 %v94
    %v173 = vpop.f32.mrb[0].mxu0
    %v174 = vadd.f32 %v80, %v173
    %v175 = vpop.f32.mrb[0].mxu0
    %v176 = vadd.f32 %v84, %v175
    %177 = vdwg.mxu0
    %v178 = vld [vmem:[#allocation8] sm:$0xff]
    %v179 = vld [vmem:[#allocation8 + $0x8] sm:$0xff]
    %181 = vset.pattern.permute.xlu0 0
    %182 = vperm.xlu0 %181, %v178
    %v183 = vpop.permute.xlu0 %182
    %186 = vset.pattern.permute.xlu0 0
    %187 = vperm.xlu0 %186, %v179
    %v188 = vpop.permute.xlu0 %187
    %v190 = vmul.f32 %v168, %v183
    %v191 = vmul.f32 %v174, %v188
    %v192 = vmul.f32 %v170, %v168
    %v193 = vmul.f32 %v176, %v174
    %196 = vrot.lane.b32.xlu0 %v170, 32
    %v197 = vpop.permute.xlu0 %196
    %198 = vrot.lane.b32.xlu0 %v176, 32
    %v199 = vpop.permute.xlu0 %198
    %v202 = vadd.f32 %v192, %v197
    %v203 = vadd.f32 %v193, %v199
    %v204 = vmax.f32 %v202, 0.0
    %v205 = vmax.f32 %v203, 0.0
    %vm206 = vcmask 261120
    %207 = vst.msk [vmem:[#allocation10] sm:$0xff] %vm206, %v168
    %208 = vst.msk [vmem:[#allocation10 + $0x8] sm:$0xff] %vm206, %v174
    %211 = vrot.lane.b32.xlu0 %v204, 96
    %v212 = vpop.permute.xlu0 %211
    %213 = vrot.lane.b32.xlu0 %v205, 96
    %v214 = vpop.permute.xlu0 %213
    %219 = vrot.lane.b32.xlu0 %v190, 96
    %v220 = vpop.permute.xlu0 %219
    %221 = vrot.lane.b32.xlu0 %v191, 96
    %v222 = vpop.permute.xlu0 %221
    %227 = vrot.lane.b32.xlu0 %v168, 96
    %v228 = vpop.permute.xlu0 %227
    %229 = vrot.lane.b32.xlu0 %v174, 96
    %v230 = vpop.permute.xlu0 %229
    %v233 = vsel %vm206, %v212, %v220
    %v234 = vsel %vm206, %v214, %v222
    %vm235 = vcmask 523264
    %v236 = vsel %vm235, %v233, %v228
    %v237 = vsel %vm235, %v234, %v230
    %vm238 = vcmask 785408
    %239 = vst.msk [vmem:[#allocation11] sm:$0xff] %vm238, %v236
    %240 = vst.msk [vmem:[#allocation11 + $0x8] sm:$0xff] %vm238, %v237
    // Predicated region
    $region34: #{tpu_custom_call.1} parent=1 // pred_check
      _
    $region35: #{tpu_custom_call.1} parent=1 // pred_check_branch
      %242 = sbr.rel (0) target = $region37
    $region36: #{tpu_custom_call.1} parent=1 // pred_region
      %s244 = ssub.s32 256, 256
      %245 = vsyncadd [#allocation4], %s244
      %s246 = sshll.u32 [#allocation10], 4
      %s247 = int_to_ptr.vmem [resolvable:$true] %s246
      %252 = dma.vmem_to_hbm [thread:$0]  %s247, 256, %s4, [#allocation4], 128, 128, 8
    $region37: #{tpu_custom_call.1} parent=1 // pred_fallthru
      _
    // Predicated region
    $region38: #{tpu_custom_call.1} parent=1 // pred_check
      _
    $region39: #{tpu_custom_call.1} parent=1 // pred_check_branch
      %254 = sbr.rel (0) target = $region41
    $region40: #{tpu_custom_call.1} parent=1 // pred_region
      %s256 = ssub.s32 256, 256
      %257 = vsyncadd [#allocation12], %s256
      %s258 = sshll.u32 [#allocation11], 4
      %s259 = int_to_ptr.vmem [resolvable:$true] %s258
      %264 = dma.vmem_to_hbm [thread:$0]  %s259, 256, %s5, [#allocation12], 128, 128, 8
    $region41: #{tpu_custom_call.1} parent=1 // pred_fallthru
      _
    // Predicated region
    $region42: #{tpu_custom_call.1} parent=1 // pred_check
      _
    $region43: #{tpu_custom_call.1} parent=1 // pred_check_branch
      %266 = sbr.rel (0) target = $region45
    $region44: #{tpu_custom_call.1} parent=1 // pred_region
      %267 = dma.done [#allocation4], 256
    $region45: #{tpu_custom_call.1} parent=1 // pred_fallthru
      _
    // Predicated region
    $region46: #{tpu_custom_call.1} parent=1 // pred_check
      _
    $region47: #{tpu_custom_call.1} parent=1 // pred_check_branch
      %269 = sbr.rel (0) target = $region49
    $region48: #{tpu_custom_call.1} parent=1 // pred_region
      %270 = dma.done [#allocation12], 256
    $region49: #{tpu_custom_call.1} parent=1 // pred_fallthru
      _
    %271 = vsyncpa [#allocation3], 1
    %272 = vsyncpa [#allocation6], 1
    %273 = vsyncpa [#allocation9], 1
    %274 = vsyncpa [#allocation4], 1
    %275 = vsyncpa [#allocation12], 1

</llo_original>
